<compile_context>
chip_gen: v7x
topology: tpu7x:2x2x1
jax: 0.10.0
libtpu: 0.0.40
codegen_flags: <defaults>
</compile_context>

<pallas_src>
import functools

import jax
import jax.numpy as jnp
from jax.experimental import pallas as pl
from jax.experimental.pallas import tpu as pltpu


def _attention_kernel(x_ref, wqkv_ref, wo_ref, bo_ref, o_ref, acc_ref,
                      *, dim_head, compute_dtype):
    h = pl.program_id(1)

    x = x_ref[0]                                   # (N, D), compute dtype
    w = wqkv_ref[h]                                # (D, 3*dh), scale folded into q cols

    # Fused QKV projection for this head: one MXU pass, f32 accumulation.
    qkv = jnp.dot(x, w, preferred_element_type=jnp.float32)        # (N, 3*dh)

    q = qkv[:, :dim_head].astype(compute_dtype)                    # already scaled
    k = qkv[:, dim_head:2 * dim_head].astype(compute_dtype)
    v = qkv[:, 2 * dim_head:].astype(compute_dtype)

    # q @ k^T without materializing a transpose: contract last dim of both.
    s = jax.lax.dot_general(q, k, (((1,), (1,)), ((), ())),
                            preferred_element_type=jnp.float32)    # (N, N) f32

    # Numerically stable softmax in f32; reciprocal on the EUP.
    m = jnp.max(s, axis=-1, keepdims=True)
    p = jnp.exp(s - m)
    attn = p * pl.reciprocal(jnp.sum(p, axis=-1, keepdims=True), approx=True)

    out_h = jnp.dot(attn.astype(compute_dtype), v,
                    preferred_element_type=jnp.float32)            # (N, dh)
    # Per-head slice of the output projection; summing over heads equals
    # concat('b n (h d)') @ Wo.
    y_h = jnp.dot(out_h.astype(compute_dtype), wo_ref[h],
                  preferred_element_type=jnp.float32)              # (N, D)

    @pl.when(h == 0)
    def _():
        acc_ref[...] = jnp.zeros_like(acc_ref)

    acc_ref[...] += y_h

    @pl.when(h == pl.num_programs(1) - 1)
    def _():
        # Note: for real ViT D (e.g. 768) this store is lane-dense; the toy
        # D=32 case incurs a masked store only once per batch element.
        o_ref[0] = (acc_ref[...] + bo_ref[...]).astype(o_ref.dtype)


def attention_forward(x, wq, wk, wv, wo, bo, *, heads, dim_head,
                      compute_dtype=None):
    B, N, D = x.shape
    dh = dim_head
    scale = dh ** (-0.5)
    out_dtype = x.dtype
    cdt = jnp.dtype(compute_dtype) if compute_dtype is not None else x.dtype

    # Host-side weight prep (done once, outside the kernel):
    #   (D, H*dh) -> (H, D, dh) per projection, fuse [q|k|v] on the last axis,
    #   and fold the softmax scale into the q columns.
    def per_head(w):
        return w.reshape(D, heads, dh).transpose(1, 0, 2)          # (H, D, dh)

    wqkv = jnp.concatenate(
        [per_head(wq * scale), per_head(wk), per_head(wv)], axis=-1
    ).astype(cdt)                                                  # (H, D, 3*dh)
    wo_h = wo.reshape(heads, dh, D).astype(cdt)                    # (H, dh, D)
    bo_f32 = bo.astype(jnp.float32)                                # (1, D)
    x_c = x.astype(cdt)

    kernel = functools.partial(_attention_kernel, dim_head=dh, compute_dtype=cdt)

    return pl.pallas_call(
        kernel,
        out_shape=jax.ShapeDtypeStruct((B, N, D), out_dtype),
        grid_spec=pltpu.PrefetchScalarGridSpec(
            num_scalar_prefetch=0,
            grid=(B, heads),
            in_specs=[
                # x: one batch element per b, re-used (not re-DMA'd) across h.
                pl.BlockSpec((1, N, D), lambda b, h: (b, 0, 0)),
                # Weights/bias: whole-array, single-buffered VMEM residents.
                pl.BlockSpec(memory_space=pltpu.MemorySpace.VMEM),   # wqkv
                pl.BlockSpec(memory_space=pltpu.MemorySpace.VMEM),   # wo
                pl.BlockSpec(memory_space=pltpu.MemorySpace.VMEM),   # bo
            ],
            out_specs=pl.BlockSpec((1, N, D), lambda b, h: (b, 0, 0)),
            scratch_shapes=[pltpu.VMEM((N, D), jnp.float32)],        # head accumulator
        ),
        compiler_params=pltpu.CompilerParams(
            dimension_semantics=("parallel", "arbitrary")),
    )(x_c, wqkv, wo_h, bo_f32)


def attention_reference(x, wq, wk, wv, wo, bo, *, heads, dim_head):
    B, N, D = x.shape
    scale = dim_head ** (-0.5)
    q = x @ wq
    k = x @ wk
    v = x @ wv

    def split(t):  # 'b n (h d) -> b h n d'
        return t.reshape(B, N, heads, dim_head).transpose(0, 2, 1, 3)

    q, k, v = split(q), split(k), split(v)
    dots = jnp.einsum('bhnd,bhmd->bhnm', q, k) * scale
    attn = jax.nn.softmax(dots, axis=-1)
    out = jnp.einsum('bhnm,bhmd->bhnd', attn, v)
    out = out.transpose(0, 2, 1, 3).reshape(B, N, heads * dim_head)
    return out @ wo + bo[0]


if __name__ == "__main__":
    # Small shapes consistent with the module: dim=32, heads=8, dim_head=16
    B, N, dim = 2, 8, 32
    heads, dim_head = 8, 16
    inner_dim = heads * dim_head

    key = jax.random.PRNGKey(0)
    kx, kq, kk, kv, ko, kb = jax.random.split(key, 6)

    x = jax.random.normal(kx, (B, N, dim), dtype=jnp.float32)
    # nn.Linear weights stored as (in, out); deterministic synthetic init.
    wq = jax.random.normal(kq, (dim, inner_dim), dtype=jnp.float32) * 0.05
    wk = jax.random.normal(kk, (dim, inner_dim), dtype=jnp.float32) * 0.05
    wv = jax.random.normal(kv, (dim, inner_dim), dtype=jnp.float32) * 0.05
    wo = jax.random.normal(ko, (inner_dim, dim), dtype=jnp.float32) * 0.05
    bo = jax.random.normal(kb, (1, dim), dtype=jnp.float32) * 0.05

    ref = attention_reference(x, wq, wk, wv, wo, bo, heads=heads, dim_head=dim_head)

    # f32 path (matches the PyTorch module's default precision).
    out = attention_forward(x, wq, wk, wv, wo, bo, heads=heads, dim_head=dim_head)
    out = jax.block_until_ready(out)
    assert out.shape == (B, N, dim)
    assert jnp.allclose(out, ref, atol=2e-3, rtol=2e-3)

    # bf16-fed MXU path (v6e/v7x recommendation); softmax/accumulation stay f32.
    out_bf16 = attention_forward(x, wq, wk, wv, wo, bo, heads=heads,
                                 dim_head=dim_head, compute_dtype=jnp.bfloat16)
    out_bf16 = jax.block_until_ready(out_bf16)
    assert out_bf16.shape == (B, N, dim)
    assert jnp.allclose(out_bf16, ref, atol=5e-2, rtol=5e-2)

    print("KERNEL_OK")
</pallas_src>

<mosaic_0001>
module attributes {stable_mosaic.version = 11 : i64} {
  func.func @_attention_kernel(%arg0: i32, %arg1: i32, %arg2: memref<1x8x32xf32, #tpu.memory_space<vmem>>, %arg3: memref<8x32x48xf32, #tpu.memory_space<vmem>>, %arg4: memref<8x16x32xf32, #tpu.memory_space<vmem>>, %arg5: memref<1x32xf32, #tpu.memory_space<vmem>>, %arg6: memref<1x8x32xf32, #tpu.memory_space<vmem>>, %arg7: memref<8x32xf32, #tpu.memory_space<vmem>>) attributes {dimension_semantics = [#tpu.dimension_semantics<parallel>, #tpu.dimension_semantics<arbitrary>], iteration_bounds = array<i64: 2, 8>, scalar_prefetch = 0 : i64, scratch_operands = 1 : i64, tpu.core_type = #tpu.core_type<tc>, window_params = [{transform_indices = @transform_0, window_bounds = array<i64: 1, 8, 32>}, {pipeline_mode = #tpu.pipeline_mode<synchronous>, transform_indices = @transform_1, window_bounds = array<i64: 8, 32, 48>}, {pipeline_mode = #tpu.pipeline_mode<synchronous>, transform_indices = @transform_2, window_bounds = array<i64: 8, 16, 32>}, {pipeline_mode = #tpu.pipeline_mode<synchronous>, transform_indices = @transform_3, window_bounds = array<i64: 1, 32>}, {transform_indices = @transform_4, window_bounds = array<i64: 1, 8, 32>}]} {
    %c0 = arith.constant 0 : index
    %c0_0 = arith.constant 0 : index
    %c0_1 = arith.constant 0 : index
    %0 = vector.load %arg2[%c0, %c0_0, %c0_1] : memref<1x8x32xf32, #tpu.memory_space<vmem>>, vector<1x8x32xf32>
    %1 = vector.shape_cast %0 : vector<1x8x32xf32> to vector<8x32xf32>
    %2 = arith.index_cast %arg1 : i32 to index
    %c0_2 = arith.constant 0 : index
    %c0_3 = arith.constant 0 : index
    %3 = vector.load %arg3[%2, %c0_2, %c0_3] : memref<8x32x48xf32, #tpu.memory_space<vmem>>, vector<1x32x48xf32>
    %4 = vector.shape_cast %3 : vector<1x32x48xf32> to vector<32x48xf32>
    %cst = arith.constant dense<0.000000e+00> : vector<8x48xf32>
    %5 = tpu.matmul %1, %4, %cst {dimension_numbers = #tpu.dot_dimension_numbers<[1], [0], [0], [1], [0, 0, 1, 1], [], []>} : vector<8x32xf32>, vector<32x48xf32>, vector<8x48xf32> -> vector<8x48xf32>
    %6 = vector.extract_strided_slice %5 {offsets = [0, 0], sizes = [8, 16], strides = [1, 1]} : vector<8x48xf32> to vector<8x16xf32>
    %7 = vector.extract_strided_slice %5 {offsets = [0, 16], sizes = [8, 16], strides = [1, 1]} : vector<8x48xf32> to vector<8x16xf32>
    %8 = vector.extract_strided_slice %5 {offsets = [0, 32], sizes = [8, 16], strides = [1, 1]} : vector<8x48xf32> to vector<8x16xf32>
    %cst_4 = arith.constant dense<0.000000e+00> : vector<8x8xf32>
    %9 = tpu.matmul %6, %7, %cst_4 {dimension_numbers = #tpu.dot_dimension_numbers<[1], [1], [0], [0], [0, 0, 1, 0], [], []>} : vector<8x16xf32>, vector<8x16xf32>, vector<8x8xf32> -> vector<8x8xf32>
    %cst_5 = arith.constant dense<0xFF800000> : vector<8xf32>
    %10 = vector.multi_reduction <maximumf>, %9, %cst_5 [1] : vector<8x8xf32> to vector<8xf32>
    %11 = vector.shape_cast %10 : vector<8xf32> to vector<8x1xf32>
    %12 = vector.broadcast %11 : vector<8x1xf32> to vector<8x8xf32>
    %13 = arith.subf %9, %12 : vector<8x8xf32>
    %14 = math.exp %13 : vector<8x8xf32>
    %cst_6 = arith.constant dense<0.000000e+00> : vector<8xf32>
    %15 = vector.multi_reduction <add>, %14, %cst_6 [1] : vector<8x8xf32> to vector<8xf32>
    %16 = vector.shape_cast %15 : vector<8xf32> to vector<8x1xf32>
    %17 = tpu.reciprocal %16 {approx = true} : vector<8x1xf32> -> vector<8x1xf32>
    %18 = vector.broadcast %17 : vector<8x1xf32> to vector<8x8xf32>
    %19 = arith.mulf %14, %18 : vector<8x8xf32>
    %cst_7 = arith.constant dense<0.000000e+00> : vector<8x16xf32>
    %20 = tpu.matmul %19, %8, %cst_7 {dimension_numbers = #tpu.dot_dimension_numbers<[1], [0], [0], [1], [0, 0, 1, 1], [], []>} : vector<8x8xf32>, vector<8x16xf32>, vector<8x16xf32> -> vector<8x16xf32>
    %21 = arith.index_cast %arg1 : i32 to index
    %c0_8 = arith.constant 0 : index
    %c0_9 = arith.constant 0 : index
    %22 = vector.load %arg4[%21, %c0_8, %c0_9] : memref<8x16x32xf32, #tpu.memory_space<vmem>>, vector<1x16x32xf32>
    %23 = vector.shape_cast %22 : vector<1x16x32xf32> to vector<16x32xf32>
    %cst_10 = arith.constant dense<0.000000e+00> : vector<8x32xf32>
    %24 = tpu.matmul %20, %23, %cst_10 {dimension_numbers = #tpu.dot_dimension_numbers<[1], [0], [0], [1], [0, 0, 1, 1], [], []>} : vector<8x16xf32>, vector<16x32xf32>, vector<8x32xf32> -> vector<8x32xf32>
    %c0_i32 = arith.constant 0 : i32
    %25 = arith.cmpi eq, %arg1, %c0_i32 : i32
    %26 = arith.extui %25 : i1 to i32
    %c0_i32_11 = arith.constant 0 : i32
    %27 = arith.cmpi ne, %26, %c0_i32_11 : i32
    scf.if %27 {
      %cst_17 = arith.constant 0.000000e+00 : f32
      %34 = vector.broadcast %cst_17 : f32 to vector<8x32xf32>
      %c0_18 = arith.constant 0 : index
      %c0_19 = arith.constant 0 : index
      %35 = vector.load %arg7[%c0_18, %c0_19] : memref<8x32xf32, #tpu.memory_space<vmem>>, vector<8x32xf32>
      tpu.vector_store %arg7[%c0_18, %c0_19], %34 {strides = array<i32>} : memref<8x32xf32, #tpu.memory_space<vmem>>, vector<8x32xf32>,
    } else {
    }
    %c0_12 = arith.constant 0 : index
    %c0_13 = arith.constant 0 : index
    %28 = vector.load %arg7[%c0_12, %c0_13] : memref<8x32xf32, #tpu.memory_space<vmem>>, vector<8x32xf32>
    %29 = arith.addf %28, %24 : vector<8x32xf32>
    %c0_14 = arith.constant 0 : index
    %c0_15 = arith.constant 0 : index
    %30 = vector.load %arg7[%c0_14, %c0_15] : memref<8x32xf32, #tpu.memory_space<vmem>>, vector<8x32xf32>
    tpu.vector_store %arg7[%c0_14, %c0_15], %29 {strides = array<i32>} : memref<8x32xf32, #tpu.memory_space<vmem>>, vector<8x32xf32>,
    %c7_i32 = arith.constant 7 : i32
    %31 = arith.cmpi eq, %arg1, %c7_i32 : i32
    %32 = arith.extui %31 : i1 to i32
    %c0_i32_16 = arith.constant 0 : i32
    %33 = arith.cmpi ne, %32, %c0_i32_16 : i32
    scf.if %33 {
      %c0_17 = arith.constant 0 : index
      %c0_18 = arith.constant 0 : index
      %34 = vector.load %arg7[%c0_17, %c0_18] : memref<8x32xf32, #tpu.memory_space<vmem>>, vector<8x32xf32>
      %c0_19 = arith.constant 0 : index
      %c0_20 = arith.constant 0 : index
      %35 = vector.load %arg5[%c0_19, %c0_20] : memref<1x32xf32, #tpu.memory_space<vmem>>, vector<1x32xf32>
      %36 = vector.broadcast %35 : vector<1x32xf32> to vector<8x32xf32>
      %37 = arith.addf %34, %36 : vector<8x32xf32>
      %c0_21 = arith.constant 0 : index
      %c0_22 = arith.constant 0 : index
      %c0_23 = arith.constant 0 : index
      %38 = vector.load %arg6[%c0_21, %c0_22, %c0_23] : memref<1x8x32xf32, #tpu.memory_space<vmem>>, vector<1x8x32xf32>
      %39 = vector.shape_cast %38 : vector<1x8x32xf32> to vector<8x32xf32>
      %40 = vector.shape_cast %37 : vector<8x32xf32> to vector<1x8x32xf32>
      tpu.vector_store %arg6[%c0_21, %c0_22, %c0_23], %40 {strides = array<i32>} : memref<1x8x32xf32, #tpu.memory_space<vmem>>, vector<1x8x32xf32>,
    } else {
    }
    return
  }
  func.func @transform_0(%arg0: i32, %arg1: i32) -> (i32, i32, i32) {
    %c0_i32 = arith.constant 0 : i32
    %c0_i32_0 = arith.constant 0 : i32
    %c0_i32_1 = arith.constant 0 : i32
    return %arg0, %c0_i32, %c0_i32_0 : i32, i32, i32
  }
  func.func @transform_1(%arg0: i32, %arg1: i32) -> (i32, i32, i32) {
    %c0_i32 = arith.constant 0 : i32
    %c0_i32_0 = arith.constant 0 : i32
    %c0_i32_1 = arith.constant 0 : i32
    %c0_i32_2 = arith.constant 0 : i32
    return %c0_i32, %c0_i32_0, %c0_i32_1 : i32, i32, i32
  }
  func.func @transform_2(%arg0: i32, %arg1: i32) -> (i32, i32, i32) {
    %c0_i32 = arith.constant 0 : i32
    %c0_i32_0 = arith.constant 0 : i32
    %c0_i32_1 = arith.constant 0 : i32
    %c0_i32_2 = arith.constant 0 : i32
    return %c0_i32, %c0_i32_0, %c0_i32_1 : i32, i32, i32
  }
  func.func @transform_3(%arg0: i32, %arg1: i32) -> (i32, i32) {
    %c0_i32 = arith.constant 0 : i32
    %c0_i32_0 = arith.constant 0 : i32
    %c0_i32_1 = arith.constant 0 : i32
    return %c0_i32, %c0_i32_0 : i32, i32
  }
  func.func @transform_4(%arg0: i32, %arg1: i32) -> (i32, i32, i32) {
    %c0_i32 = arith.constant 0 : i32
    %c0_i32_0 = arith.constant 0 : i32
    %c0_i32_1 = arith.constant 0 : i32
    return %arg0, %c0_i32, %c0_i32_0 : i32, i32, i32
  }
}

</mosaic_0001>

<llo_original>
// kernel: tpu_custom_call.1
$region0: #{tpu_custom_call.1}
  #allocation0 [shape = 'u32[]', space=smem, size = 0x4, offset = 0x4, fixed_abs, tag = 'smem constant byte address 0x4 - core index']
  #allocation1 [shape = 'u32[144,128]{1,0:T(1,128)}', space=vmem, size = 0x12000, scoped, tag = 'internal scratch']
  #allocation2 [shape = 'f32[8,32]{1,0:T(8,128)}', space=vmem, size = 0x1000, scoped, tag = 'scratch operand']
  %s0 = inlined_call_operand.hbm [shape: f32[2,8,32], index: 0, kind: input, shape index: {}]
  %s1 = inlined_call_operand.hbm [shape: f32[8,32,48], index: 1, kind: input, shape index: {}]
  %s2 = inlined_call_operand.hbm [shape: f32[8,16,32], index: 2, kind: input, shape index: {}]
  %s3 = inlined_call_operand.vmem [shape: f32[1,32], index: 3, kind: input, shape index: {}]
  %s4 = inlined_call_operand.hbm [shape: f32[2,8,32], index: 4, kind: output, shape index: {}]
  %s5 = sld [smem:[#allocation0]]
  $region69: #{tpu_custom_call.1} parent=0
    _
  %s7 = ssub.s32 1, %s5
  %s8 = scalar_select 0, %s7, %s5
  $region1: #{tpu_custom_call.1} parent=0
    #allocation3 [shape = 'u8[8192]{0}', space=vmem, size = 0x2000, scoped, tag = 'input window, operand 0']
    #allocation4 [shape = 's32[2]{0}', space=sflag, size = 0x8, scoped, tag = 'scoped memory for tpu_custom_call.1']
    #allocation5 [shape = 's32[2]{0}', space=sflag, size = 0x8, scoped, tag = 'scoped memory for tpu_custom_call.1']
    #allocation6 [shape = 'u8[131072]{0}', space=vmem, size = 0x20000, scoped, tag = 'input window, operand 1, single buffered']
    #allocation7 [shape = 's32[1]{0}', space=sflag, size = 0x4, scoped, tag = 'scoped memory for tpu_custom_call.1']
    #allocation8 [shape = 'u8[65536]{0}', space=vmem, size = 0x10000, scoped, tag = 'input window, operand 2, single buffered']
    #allocation9 [shape = 'u8[8192]{0}', space=vmem, size = 0x2000, scoped, tag = 'output window, operand 0']
    %9 = vsyncpa [#allocation4], 0
    %s10 = scalar_lea.sflag [#allocation4], 1
    %11 = vsyncpa %s10, 0
    %12 = vsyncpa [#allocation7], 0
    %13 = vsyncpa [#allocation5], 0
    %s14 = scalar_lea.sflag [#allocation5], 1
    %15 = vsyncpa %s14, 0
    loop: start=0, step=1, limit=18
    $region2: #{tpu_custom_call.1} parent=1 // loop_pre_header
      _
    $region3: #{tpu_custom_call.1} parent=1 // loop_header
      %s17 = sphi 0, %s21
      %p18 = scmp.ge.s32.totalorder %s17, 18
      %s24 = sphi 0, %s36
      %s25 = sphi 0, %s32
      %s26 = sphi 0, %s24
      %s27 = sphi 0, %s25
      %s28 = sphi 0, %s26
      %s29 = sphi 0, %s27
      %s39 = sphi 0, %s41
      %s42 = sphi 0, %s39
      %s43 = sphi 0, %s42
      %s59 = sphi 0, %s43
      %s63 = sphi 0, %s63
      %s65 = sphi 0, %s63
      %s66 = sphi 0, %s65
      %s80 = sphi 0, %s66
      %s84 = sphi 0, %s84
      %s86 = sphi 0, %s84
      %s87 = sphi 0, %s86
      %s101 = sphi 0, %s87
      %s105 = sphi 0, %s105
      %s107 = sphi 0, %s105
      %s108 = sphi 0, %s107
      %s122 = sphi 0, %s108
      %s128 = sphi 0, %s130
      %s131 = sphi 0, %s128
      %s132 = sphi 0, %s131
      %s148 = sphi 0, %s132
    $region4: #{tpu_custom_call.1} parent=1 // loop_header_branch
      %20 = sbr.rel (%p18) target = $region8
    $region5: #{tpu_custom_call.1} parent=1 // loop_body
      %s22 = ssub.s32 %s17, 1
      %s23 = ssub.s32 %s17, 2
      %s30 = sadd.s32 1, %s25
      %p31 = scmp.ge.s32.totalorder %s30, 8
      %s32 = scalar_select %p31, 0, %s30
      %s33 = sadd.s32 1, %s24
      %s34 = scalar_select %p31, %s33, %s24
      %p35 = scmp.ge.s32.totalorder %s34, 2
      %s36 = scalar_select %p35, 0, %s34
      %s37 = ssub.s32 %s24, %s36
      %p38 = scmp.eq.s32.totalorder %s37, 0
      %s40 = sadd.s32 %s39, 1
      %s41 = scalar_select %p38, %s39, %s40
      %p44 = pneg %p38
      %p45 = scmp.eq.s32.totalorder %s17, 15
      %p46 = por %p44, %p45
      %p47 = scmp.ne.s32.totalorder %s39, %s42
      %p48 = scmp.eq.s32.totalorder %s17, 0
      %p49 = por %p47, %p48
      %p50 = scmp.ne.s32.totalorder %s39, %s42
      %p51 = scmp.eq.s32.totalorder %s22, 15
      %p52 = por %p50, %p51
      %p53 = scmp.ne.s32.totalorder %s42, %s43
      %p54 = scmp.eq.s32.totalorder %s22, 0
      %p55 = por %p53, %p54
      %p56 = scmp.ne.s32.totalorder %s42, %s43
      %p57 = scmp.eq.s32.totalorder %s23, 15
      %p58 = por %p56, %p57
      %p60 = scmp.ne.s32.totalorder %s43, %s59
      %p61 = scmp.eq.s32.totalorder %s23, 0
      %p62 = por %p60, %p61
      %s64 = sadd.s32 %s63, 1
      %p67 = scmp.eq.s32.totalorder %s17, 15
      %p68 = scmp.ne.s32.totalorder %s63, %s65
      %p69 = scmp.eq.s32.totalorder %s17, 0
      %p70 = por %p68, %p69
      %p71 = scmp.ne.s32.totalorder %s63, %s65
      %p72 = scmp.eq.s32.totalorder %s22, 15
      %p73 = por %p71, %p72
      %p74 = scmp.ne.s32.totalorder %s65, %s66
      %p75 = scmp.eq.s32.totalorder %s22, 0
      %p76 = por %p74, %p75
      %p77 = scmp.ne.s32.totalorder %s65, %s66
      %p78 = scmp.eq.s32.totalorder %s23, 15
      %p79 = por %p77, %p78
      %p81 = scmp.ne.s32.totalorder %s66, %s80
      %p82 = scmp.eq.s32.totalorder %s23, 0
      %p83 = por %p81, %p82
      %s85 = sadd.s32 %s84, 1
      %p88 = scmp.eq.s32.totalorder %s17, 15
      %p89 = scmp.ne.s32.totalorder %s84, %s86
      %p90 = scmp.eq.s32.totalorder %s17, 0
      %p91 = por %p89, %p90
      %p92 = scmp.ne.s32.totalorder %s84, %s86
      %p93 = scmp.eq.s32.totalorder %s22, 15
      %p94 = por %p92, %p93
      %p95 = scmp.ne.s32.totalorder %s86, %s87
      %p96 = scmp.eq.s32.totalorder %s22, 0
      %p97 = por %p95, %p96
      %p98 = scmp.ne.s32.totalorder %s86, %s87
      %p99 = scmp.eq.s32.totalorder %s23, 15
      %p100 = por %p98, %p99
      %p102 = scmp.ne.s32.totalorder %s87, %s101
      %p103 = scmp.eq.s32.totalorder %s23, 0
      %p104 = por %p102, %p103
      %s106 = sadd.s32 %s105, 1
      %p109 = scmp.eq.s32.totalorder %s17, 15
      %p110 = scmp.ne.s32.totalorder %s105, %s107
      %p111 = scmp.eq.s32.totalorder %s17, 0
      %p112 = por %p110, %p111
      %p113 = scmp.ne.s32.totalorder %s105, %s107
      %p114 = scmp.eq.s32.totalorder %s22, 15
      %p115 = por %p113, %p114
      %p116 = scmp.ne.s32.totalorder %s107, %s108
      %p117 = scmp.eq.s32.totalorder %s22, 0
      %p118 = por %p116, %p117
      %p119 = scmp.ne.s32.totalorder %s107, %s108
      %p120 = scmp.eq.s32.totalorder %s23, 15
      %p121 = por %p119, %p120
      %p123 = scmp.ne.s32.totalorder %s108, %s122
      %p124 = scmp.eq.s32.totalorder %s23, 0
      %p125 = por %p123, %p124
      %s126 = ssub.s32 %s24, %s36
      %p127 = scmp.eq.s32.totalorder %s126, 0
      %s129 = sadd.s32 %s128, 1
      %s130 = scalar_select %p127, %s128, %s129
      %p133 = pneg %p127
      %p134 = scmp.eq.s32.totalorder %s17, 15
      %p135 = por %p133, %p134
      %p136 = scmp.ne.s32.totalorder %s128, %s131
      %p137 = scmp.eq.s32.totalorder %s17, 0
      %p138 = por %p136, %p137
      %p139 = scmp.ne.s32.totalorder %s128, %s131
      %p140 = scmp.eq.s32.totalorder %s22, 15
      %p141 = por %p139, %p140
      %p142 = scmp.ne.s32.totalorder %s131, %s132
      %p143 = scmp.eq.s32.totalorder %s22, 0
      %p144 = por %p142, %p143
      %p145 = scmp.ne.s32.totalorder %s131, %s132
      %p146 = scmp.eq.s32.totalorder %s23, 15
      %p147 = por %p145, %p146
      %p149 = scmp.ne.s32.totalorder %s132, %s148
      %p150 = scmp.eq.s32.totalorder %s23, 0
      %p151 = por %p149, %p150
      %p152 = scmp.le.s32.totalorder 1, %s17
      %p153 = scmp.lt.s32.totalorder %s17, 17
      %p154 = pnand %p152, %p153
      %p155 = pneg %p154
      // Predicated region
      $region9: #{tpu_custom_call.1} parent=5 // pred_check
        _
      $region10: #{tpu_custom_call.1} parent=5 // pred_check_branch
        %157 = sbr.rel (%p154) target = $region12
      $region11: #{tpu_custom_call.1} parent=5 // pred_region
        %s158 = ssub.s32 %s17, 1
        // Predicated region
        $region13: #{tpu_custom_call.1} parent=11 // pred_check
          %p159 = pneg %p76
        $region14: #{tpu_custom_call.1} parent=11 // pred_check_branch
          %161 = sbr.rel (%p159) target = $region16
        $region15: #{tpu_custom_call.1} parent=11 // pred_region
          %s163 = ssub.s32 4096, 4096
          %164 = vsyncadd [#allocation7], %s163
          %s165 = sshll.u32 [#allocation6], 4
          %s166 = int_to_ptr.vmem [resolvable:$true] %s165
          %171 = dma.hbm_to_vmem [thread:$0]  %s1, 4096, %s166, [#allocation7], 128, 128, 8
        $region16: #{tpu_custom_call.1} parent=11 // pred_fallthru
          _
        // Predicated region
        $region17: #{tpu_custom_call.1} parent=11 // pred_check
          %p172 = pneg %p97
        $region18: #{tpu_custom_call.1} parent=11 // pred_check_branch
          %174 = sbr.rel (%p172) target = $region20
        $region19: #{tpu_custom_call.1} parent=11 // pred_region
          %s176 = ssub.s32 2048, 2048
          %177 = vsyncadd [#allocation7], %s176
          %s178 = sshll.u32 [#allocation8], 4
          %s179 = int_to_ptr.vmem [resolvable:$true] %s178
          %184 = dma.hbm_to_vmem [thread:$0]  %s2, 2048, %s179, [#allocation7], 128, 128, 8
        $region20: #{tpu_custom_call.1} parent=11 // pred_fallthru
          _
        // Predicated region
        $region21: #{tpu_custom_call.1} parent=11 // pred_check
          %p185 = pneg %p118
        $region22: #{tpu_custom_call.1} parent=11 // pred_check_branch
          %187 = sbr.rel (%p185) target = $region24
        $region23: #{tpu_custom_call.1} parent=11 // pred_region
          _
        $region24: #{tpu_custom_call.1} parent=11 // pred_fallthru
          _
      $region12: #{tpu_custom_call.1} parent=5 // pred_fallthru
        _
      %p188 = scmp.lt.s32.totalorder %s17, 16
      // Predicated region
      $region25: #{tpu_custom_call.1} parent=5 // pred_check
        %p189 = pneg %p188
      $region26: #{tpu_custom_call.1} parent=5 // pred_check_branch
        %191 = sbr.rel (%p189) target = $region28
      $region27: #{tpu_custom_call.1} parent=5 // pred_region
        // Predicated region
        $region29: #{tpu_custom_call.1} parent=27 // pred_check
          %p192 = pneg %p49
        $region30: #{tpu_custom_call.1} parent=27 // pred_check_branch
          %194 = sbr.rel (%p192) target = $region32
        $region31: #{tpu_custom_call.1} parent=27 // pred_region
          %s195 = sand.u32 %s39, 1
          %s196 = scalar_lea.sflag [#allocation4], %s195
          %s197 = sand.u32 %s39, 1
          %s198 = smul.addr %s197, 8
          %s199 = scalar_lea.vmem [#allocation3], %s198
          %s201 = ssub.s32 128, 128
          %202 = vsyncadd %s196, %s201
          %s203 = smul.addr %s24, 128
          %s204 = scalar_lea.hbm %s0, %s203
          %s206 = sshll.u32 %s199, 4
          %s207 = int_to_ptr.vmem [resolvable:$true] %s206
          %209 = dma.hbm_to_vmem [thread:$0]  %s204, 128, %s207, %s196
        $region32: #{tpu_custom_call.1} parent=27 // pred_fallthru
          _
      $region28: #{tpu_custom_call.1} parent=5 // pred_fallthru
        _
      %p210 = scmp.le.s32.totalorder 1, %s17
      %p211 = scmp.lt.s32.totalorder %s17, 17
      %p212 = pnand %p210, %p211
      %p213 = pneg %p212
      // Predicated region
      $region33: #{tpu_custom_call.1} parent=5 // pred_check
        _
      $region34: #{tpu_custom_call.1} parent=5 // pred_check_branch
        %215 = sbr.rel (%p212) target = $region36
      $region35: #{tpu_custom_call.1} parent=5 // pred_region
        %s216 = ssub.s32 %s17, 1
        %s217 = sand.u32 %s42, 1
        %s218 = scalar_lea.sflag [#allocation4], %s217
        %s219 = sand.u32 %s42, 1
        %s220 = smul.addr %s219, 8
        %s221 = scalar_lea.vmem [#allocation3], %s220
        // Predicated region
        $region37: #{tpu_custom_call.1} parent=35 // pred_check
          %p222 = pneg %p55
        $region38: #{tpu_custom_call.1} parent=35 // pred_check_branch
          %224 = sbr.rel (%p222) target = $region40
        $region39: #{tpu_custom_call.1} parent=35 // pred_region
          %225 = dma.done %s218, 128
        $region40: #{tpu_custom_call.1} parent=35 // pred_fallthru
          _
        // Predicated region
        $region41: #{tpu_custom_call.1} parent=35 // pred_check
          %p226 = pneg %p76
        $region42: #{tpu_custom_call.1} parent=35 // pred_check_branch
          %228 = sbr.rel (%p226) target = $region44
        $region43: #{tpu_custom_call.1} parent=35 // pred_region
          %229 = dma.done [#allocation7], 4096
        $region44: #{tpu_custom_call.1} parent=35 // pred_fallthru
          _
        // Predicated region
        $region45: #{tpu_custom_call.1} parent=35 // pred_check
          %p230 = pneg %p97
        $region46: #{tpu_custom_call.1} parent=35 // pred_check_branch
          %232 = sbr.rel (%p230) target = $region48
        $region47: #{tpu_custom_call.1} parent=35 // pred_region
          %233 = dma.done [#allocation7], 2048
        $region48: #{tpu_custom_call.1} parent=35 // pred_fallthru
          _
        %s234 = sand.u32 %s42, 1
        %s235 = scalar_lea.sflag [#allocation4], %s234
        %s236 = sand.u32 %s42, 1
        %s237 = smul.addr %s236, 8
        %s238 = scalar_lea.vmem [#allocation3], %s237
        %p239 = pneg %p55
        %p240 = pneg %p52
        %p241 = pneg %p76
        %p242 = pneg %p73
        %p243 = pneg %p97
        %p244 = pneg %p94
        %p245 = pneg %p118
        %p246 = pneg %p115
        %p247 = pneg %p144
        %p248 = pneg %p141
        %s249 = sand.u32 %s131, 1
        %s250 = scalar_lea.sflag [#allocation5], %s249
        %s251 = sand.u32 %s131, 1
        %s252 = smul.addr %s251, 8
        %s253 = scalar_lea.vmem [#allocation9], %s252
        %v254 = vld [vmem:[%s221] sm:$0xff]
        %s255 = smul.u32 %s27, 32
        %s256 = scalar_lea.vmem [#allocation6], %s255
        %v257 = vld [vmem:[%s256] sm:$0xff]
        %v258 = vld [vmem:[%s256 + $0x8] sm:$0xff]
        %v259 = vld [vmem:[%s256 + $0x10] sm:$0xff]
        %v260 = vld [vmem:[%s256 + $0x18] sm:$0xff]
        %vm261 = vcmask 261120
        %v263 = vsel %vm261, %v254, 0
        %265 = vmatprep.subr.mxu0 0.0
        %266 = vmatpush1.msra.mxu0 %v257
        %267 = vmatprep.subr.mxu0 0.0
        %268 = vmatpush1.msra.mxu0 %v258
        %269 = vmatprep.subr.mxu0 0.0
        %270 = vmatpush1.msra.mxu0 %v259
        %271 = vmatprep.subr.mxu0 0.0
        %272 = vmatpush1.msra.mxu0 %v260
        %273 = vmatprep.subr.mxu0 0.0
        %274 = vmatpush1.msra.mxu0 0.0
        %275 = vmatprep.subr.mxu0 0.0
        %276 = vmatpush1.msra.mxu0 0.0
        %277 = vmatprep.subr.mxu0 0.0
        %278 = vmatpush1.msra.mxu0 0.0
        %279 = vmatprep.subr.mxu0 0.0
        %280 = vmatpush1.msra.mxu0 0.0
        %281 = vmatprep.subr.mxu0 0.0
        %282 = vmatpush1.msra.mxu0 0.0
        %283 = vmatprep.subr.mxu0 0.0
        %284 = vmatpush1.msra.mxu0 0.0
        %285 = vmatprep.subr.mxu0 0.0
        %286 = vmatpush1.msra.mxu0 0.0
        %287 = vmatprep.subr.mxu0 0.0
        %288 = vmatpush1.msra.mxu0 0.0
        %289 = vmatprep.subr.mxu0 0.0
        %290 = vmatpush1.msra.mxu0 0.0
        %291 = vmatprep.subr.mxu0 0.0
        %292 = vmatpush1.msra.mxu0 0.0
        %293 = vmatprep.subr.mxu0 0.0
        %294 = vmatpush1.msra.mxu0 0.0
        %295 = vmatprep.subr.mxu0 0.0
        %296 = vmatpush1.msra.mxu0 0.0
        %297 = vmatprep.subr.mxu0 0.0
        %298 = vmatpush1.msra.mxu0 0.0
        %299 = vmatprep.subr.mxu0 0.0
        %300 = vmatpush1.msra.mxu0 0.0
        %301 = vmatprep.subr.mxu0 0.0
        %302 = vmatpush1.msra.mxu0 0.0
        %303 = vmatprep.subr.mxu0 0.0
        %304 = vmatpush1.msra.mxu0 0.0
        %305 = vmatprep.subr.mxu0 0.0
        %306 = vmatpush1.msra.mxu0 0.0
        %307 = vmatprep.subr.mxu0 0.0
        %308 = vmatpush1.msra.mxu0 0.0
        %309 = vmatprep.subr.mxu0 0.0
        %310 = vmatpush1.msra.mxu0 0.0
        %311 = vmatprep.subr.mxu0 0.0
        %312 = vmatpush1.msra.mxu0 0.0
        %313 = vmatprep.subr.mxu0 0.0
        %314 = vmatpush1.msra.mxu0 0.0
        %315 = vmatprep.subr.mxu0 0.0
        %316 = vmatpush1.msra.mxu0 0.0
        %317 = vmatprep.subr.mxu0 0.0
        %318 = vmatpush1.msra.mxu0 0.0
        %319 = vmatprep.subr.mxu0 0.0
        %320 = vmatpush1.msra.mxu0 0.0
        %321 = vmatprep.subr.mxu0 0.0
        %322 = vmatpush1.msra.mxu0 0.0
        %323 = vmatprep.subr.mxu0 0.0
        %324 = vmatpush1.msra.mxu0 0.0
        %325 = vmatprep.subr.mxu0 0.0
        %326 = vmatpush1.msra.mxu0 0.0
        %327 = vmatprep.subr.mxu0 0.0
        %328 = vmatpush1.msra.mxu0 0.0
        %329 = vmatprep.mubr.f32.mxu0 0.0
        %330 = vmatmul.mubr.f32.gmra.mrb[0].mxu0 %v263
        %v331 = vpop.f32.mrb[0].mxu0
        %v332 = vadd.f32 0.0, %v331
        %v333 = vpop.f32.mrb[0].mxu0
        %334 = vdwg.mxu0
        %336 = vrot.lane.b32.xlu0 %v332, 112
        %v337 = vpop.permute.xlu0 %336
        %vm338 = vcmask 130048
        %v339 = vsel %vm338, %v332, 0
        %v341 = vsel %vm338, %v337, 0
        %343 = vmatprep.subr.mxu0 0.0
        %344 = vmatpush1.xpose.msra.mxu0 %v341
        %345 = vmatprep.subr.mxu0 0.0
        %346 = vmatpush1.xpose.msra.mxu0 0.0
        %347 = vmatprep.subr.mxu0 0.0
        %348 = vmatpush1.xpose.msra.mxu0 0.0
        %349 = vmatprep.subr.mxu0 0.0
        %350 = vmatpush1.xpose.msra.mxu0 0.0
        %351 = vmatprep.subr.mxu0 0.0
        %352 = vmatpush1.xpose.msra.mxu0 0.0
        %353 = vmatprep.subr.mxu0 0.0
        %354 = vmatpush1.xpose.msra.mxu0 0.0
        %355 = vmatprep.subr.mxu0 0.0
        %356 = vmatpush1.xpose.msra.mxu0 0.0
        %357 = vmatprep.subr.mxu0 0.0
        %358 = vmatpush1.xpose.msra.mxu0 0.0
        %359 = vmatprep.subr.mxu0 0.0
        %360 = vmatpush1.xpose.msra.mxu0 0.0
        %361 = vmatprep.subr.mxu0 0.0
        %362 = vmatpush1.xpose.msra.mxu0 0.0
        %363 = vmatprep.subr.mxu0 0.0
        %364 = vmatpush1.xpose.msra.mxu0 0.0
        %365 = vmatprep.subr.mxu0 0.0
        %366 = vmatpush1.xpose.msra.mxu0 0.0
        %367 = vmatprep.subr.mxu0 0.0
        %368 = vmatpush1.xpose.msra.mxu0 0.0
        %369 = vmatprep.subr.mxu0 0.0
        %370 = vmatpush1.xpose.msra.mxu0 0.0
        %371 = vmatprep.subr.mxu0 0.0
        %372 = vmatpush1.xpose.msra.mxu0 0.0
        %373 = vmatprep.subr.mxu0 0.0
        %374 = vmatpush1.xpose.msra.mxu0 0.0
        %375 = vmatprep.subr.mxu0 0.0
        %376 = vmatpush1.xpose.msra.mxu0 0.0
        %377 = vmatprep.subr.mxu0 0.0
        %378 = vmatpush1.xpose.msra.mxu0 0.0
        %379 = vmatprep.subr.mxu0 0.0
        %380 = vmatpush1.xpose.msra.mxu0 0.0
        %381 = vmatprep.subr.mxu0 0.0
        %382 = vmatpush1.xpose.msra.mxu0 0.0
        %383 = vmatprep.subr.mxu0 0.0
        %384 = vmatpush1.xpose.msra.mxu0 0.0
        %385 = vmatprep.subr.mxu0 0.0
        %386 = vmatpush1.xpose.msra.mxu0 0.0
        %387 = vmatprep.subr.mxu0 0.0
        %388 = vmatpush1.xpose.msra.mxu0 0.0
        %389 = vmatprep.subr.mxu0 0.0
        %390 = vmatpush1.xpose.msra.mxu0 0.0
        %391 = vmatprep.subr.mxu0 0.0
        %392 = vmatpush1.xpose.msra.mxu0 0.0
        %393 = vmatprep.subr.mxu0 0.0
        %394 = vmatpush1.xpose.msra.mxu0 0.0
        %395 = vmatprep.subr.mxu0 0.0
        %396 = vmatpush1.xpose.msra.mxu0 0.0
        %397 = vmatprep.subr.mxu0 0.0
        %398 = vmatpush1.xpose.msra.mxu0 0.0
        %399 = vmatprep.subr.mxu0 0.0
        %400 = vmatpush1.xpose.msra.mxu0 0.0
        %401 = vmatprep.subr.mxu0 0.0
        %402 = vmatpush1.xpose.msra.mxu0 0.0
        %403 = vmatprep.subr.mxu0 0.0
        %404 = vmatpush1.xpose.msra.mxu0 0.0
        %405 = vmatprep.subr.mxu0 0.0
        %406 = vmatpush1.xpose.msra.mxu0 0.0
        %407 = vmatprep.mubr.f32.mxu0 0.0
        %408 = vmatmul.mubr.f32.gmra.mrb[0].mxu0 %v339
        %v409 = vpop.f32.mrb[0].mxu0
        %v410 = vadd.f32 0.0, %v409
        %v411 = vpop.f32.mrb[0].mxu0
        %412 = vdwg.mxu0
        %vm413 = vcmask 64512
        %v414 = vsel %vm413, %v410, -inf
        %415 = vmax.xlane.f32.xlu0 %v414
        %v416 = vpop.xlane.xlu0 %415
        %v417 = vsub.f32 %v410, %v416
        %v418 = vmul.f32 %v417, 1.442695
        %v419 = vpow.pop %v418
        %v420 = vsel %vm413, %v419, 0.0
        %421 = vadd.xlane.f32.xlu0 %v420
        %v422 = vpop.xlane.xlu0 %421
        %v423 = vrcp.pop %v422
        %v424 = vmul.f32 %v419, %v423
        %425 = vrot.lane.b32.xlu0 %v332, 96
        %v426 = vpop.permute.xlu0 %425
        %v429 = vsel %vm413, %v424, 0
        %431 = vmatprep.subr.mxu0 0.0
        %432 = vmatpush1.msra.mxu0 %v426
        %433 = vmatprep.subr.mxu0 0.0
        %434 = vmatpush1.msra.mxu0 0.0
        %435 = vmatprep.subr.mxu0 0.0
        %436 = vmatpush1.msra.mxu0 0.0
        %437 = vmatprep.subr.mxu0 0.0
        %438 = vmatpush1.msra.mxu0 0.0
        %439 = vmatprep.subr.mxu0 0.0
        %440 = vmatpush1.msra.mxu0 0.0
        %441 = vmatprep.subr.mxu0 0.0
        %442 = vmatpush1.msra.mxu0 0.0
        %443 = vmatprep.subr.mxu0 0.0
        %444 = vmatpush1.msra.mxu0 0.0
        %445 = vmatprep.subr.mxu0 0.0
        %446 = vmatpush1.msra.mxu0 0.0
        %447 = vmatprep.subr.mxu0 0.0
        %448 = vmatpush1.msra.mxu0 0.0
        %449 = vmatprep.subr.mxu0 0.0
        %450 = vmatpush1.msra.mxu0 0.0
        %451 = vmatprep.subr.mxu0 0.0
        %452 = vmatpush1.msra.mxu0 0.0
        %453 = vmatprep.subr.mxu0 0.0
        %454 = vmatpush1.msra.mxu0 0.0
        %455 = vmatprep.subr.mxu0 0.0
        %456 = vmatpush1.msra.mxu0 0.0
        %457 = vmatprep.subr.mxu0 0.0
        %458 = vmatpush1.msra.mxu0 0.0
        %459 = vmatprep.subr.mxu0 0.0
        %460 = vmatpush1.msra.mxu0 0.0
        %461 = vmatprep.subr.mxu0 0.0
        %462 = vmatpush1.msra.mxu0 0.0
        %463 = vmatprep.subr.mxu0 0.0
        %464 = vmatpush1.msra.mxu0 0.0
        %465 = vmatprep.subr.mxu0 0.0
        %466 = vmatpush1.msra.mxu0 0.0
        %467 = vmatprep.subr.mxu0 0.0
        %468 = vmatpush1.msra.mxu0 0.0
        %469 = vmatprep.subr.mxu0 0.0
        %470 = vmatpush1.msra.mxu0 0.0
        %471 = vmatprep.subr.mxu0 0.0
        %472 = vmatpush1.msra.mxu0 0.0
        %473 = vmatprep.subr.mxu0 0.0
        %474 = vmatpush1.msra.mxu0 0.0
        %475 = vmatprep.subr.mxu0 0.0
        %476 = vmatpush1.msra.mxu0 0.0
        %477 = vmatprep.subr.mxu0 0.0
        %478 = vmatpush1.msra.mxu0 0.0
        %479 = vmatprep.subr.mxu0 0.0
        %480 = vmatpush1.msra.mxu0 0.0
        %481 = vmatprep.subr.mxu0 0.0
        %482 = vmatpush1.msra.mxu0 0.0
        %483 = vmatprep.subr.mxu0 0.0
        %484 = vmatpush1.msra.mxu0 0.0
        %485 = vmatprep.subr.mxu0 0.0
        %486 = vmatpush1.msra.mxu0 0.0
        %487 = vmatprep.subr.mxu0 0.0
        %488 = vmatpush1.msra.mxu0 0.0
        %489 = vmatprep.subr.mxu0 0.0
        %490 = vmatpush1.msra.mxu0 0.0
        %491 = vmatprep.subr.mxu0 0.0
        %492 = vmatpush1.msra.mxu0 0.0
        %493 = vmatprep.subr.mxu0 0.0
        %494 = vmatpush1.msra.mxu0 0.0
        %495 = vmatprep.mubr.f32.mxu0 0.0
        %496 = vmatmul.mubr.f32.gmra.mrb[0].mxu0 %v429
        %v497 = vpop.f32.mrb[0].mxu0
        %v498 = vadd.f32 0.0, %v497
        %v499 = vpop.f32.mrb[0].mxu0
        %500 = vdwg.mxu0
        %s501 = smul.u32 %s27, 16
        %s502 = scalar_lea.vmem [#allocation8], %s501
        %v503 = vld [vmem:[%s502] sm:$0xff]
        %v504 = vld [vmem:[%s502 + $0x8] sm:$0xff]
        %v506 = vsel %vm338, %v498, 0
        %508 = vmatprep.subr.mxu0 0.0
        %509 = vmatpush1.msra.mxu0 %v503
        %510 = vmatprep.subr.mxu0 0.0
        %511 = vmatpush1.msra.mxu0 %v504
        %512 = vmatprep.subr.mxu0 0.0
        %513 = vmatpush1.msra.mxu0 0.0
        %514 = vmatprep.subr.mxu0 0.0
        %515 = vmatpush1.msra.mxu0 0.0
        %516 = vmatprep.subr.mxu0 0.0
        %517 = vmatpush1.msra.mxu0 0.0
        %518 = vmatprep.subr.mxu0 0.0
        %519 = vmatpush1.msra.mxu0 0.0
        %520 = vmatprep.subr.mxu0 0.0
        %521 = vmatpush1.msra.mxu0 0.0
        %522 = vmatprep.subr.mxu0 0.0
        %523 = vmatpush1.msra.mxu0 0.0
        %524 = vmatprep.subr.mxu0 0.0
        %525 = vmatpush1.msra.mxu0 0.0
        %526 = vmatprep.subr.mxu0 0.0
        %527 = vmatpush1.msra.mxu0 0.0
        %528 = vmatprep.subr.mxu0 0.0
        %529 = vmatpush1.msra.mxu0 0.0
        %530 = vmatprep.subr.mxu0 0.0
        %531 = vmatpush1.msra.mxu0 0.0
        %532 = vmatprep.subr.mxu0 0.0
        %533 = vmatpush1.msra.mxu0 0.0
        %534 = vmatprep.subr.mxu0 0.0
        %535 = vmatpush1.msra.mxu0 0.0
        %536 = vmatprep.subr.mxu0 0.0
        %537 = vmatpush1.msra.mxu0 0.0
        %538 = vmatprep.subr.mxu0 0.0
        %539 = vmatpush1.msra.mxu0 0.0
        %540 = vmatprep.subr.mxu0 0.0
        %541 = vmatpush1.msra.mxu0 0.0
        %542 = vmatprep.subr.mxu0 0.0
        %543 = vmatpush1.msra.mxu0 0.0
        %544 = vmatprep.subr.mxu0 0.0
        %545 = vmatpush1.msra.mxu0 0.0
        %546 = vmatprep.subr.mxu0 0.0
        %547 = vmatpush1.msra.mxu0 0.0
        %548 = vmatprep.subr.mxu0 0.0
        %549 = vmatpush1.msra.mxu0 0.0
        %550 = vmatprep.subr.mxu0 0.0
        %551 = vmatpush1.msra.mxu0 0.0
        %552 = vmatprep.subr.mxu0 0.0
        %553 = vmatpush1.msra.mxu0 0.0
        %554 = vmatprep.subr.mxu0 0.0
        %555 = vmatpush1.msra.mxu0 0.0
        %556 = vmatprep.subr.mxu0 0.0
        %557 = vmatpush1.msra.mxu0 0.0
        %558 = vmatprep.subr.mxu0 0.0
        %559 = vmatpush1.msra.mxu0 0.0
        %560 = vmatprep.subr.mxu0 0.0
        %561 = vmatpush1.msra.mxu0 0.0
        %562 = vmatprep.subr.mxu0 0.0
        %563 = vmatpush1.msra.mxu0 0.0
        %564 = vmatprep.subr.mxu0 0.0
        %565 = vmatpush1.msra.mxu0 0.0
        %566 = vmatprep.subr.mxu0 0.0
        %567 = vmatpush1.msra.mxu0 0.0
        %568 = vmatprep.subr.mxu0 0.0
        %569 = vmatpush1.msra.mxu0 0.0
        %570 = vmatprep.subr.mxu0 0.0
        %571 = vmatpush1.msra.mxu0 0.0
        %572 = vmatprep.mubr.f32.mxu0 0.0
        %573 = vmatmul.mubr.f32.gmra.mrb[0].mxu0 %v506
        %v574 = vpop.f32.mrb[0].mxu0
        %v575 = vadd.f32 0.0, %v574
        %v576 = vpop.f32.mrb[0].mxu0
        %577 = vdwg.mxu0
        %p578 = scmp.eq.s32.totalorder %s27, 0
        // Predicated region
        $region49: #{tpu_custom_call.1} parent=35 // pred_check
          %p579 = pneg %p578
        $region50: #{tpu_custom_call.1} parent=35 // pred_check_branch
          %581 = sbr.rel (%p579) target = $region52
        $region51: #{tpu_custom_call.1} parent=35 // pred_region
          %582 = vst.msk [vmem:[#allocation2] sm:$0xff] %vm261, 0.0
        $region52: #{tpu_custom_call.1} parent=35 // pred_fallthru
          _
        %v583 = vld [vmem:[#allocation2] sm:$0xff]
        %v584 = vadd.f32 %v583, %v575
        %585 = vst.msk [vmem:[#allocation2] sm:$0xff] %vm261, %v584
        %p586 = scmp.eq.s32.totalorder %s27, 7
        // Predicated region
        $region53: #{tpu_custom_call.1} parent=35 // pred_check
          %p587 = pneg %p586
        $region54: #{tpu_custom_call.1} parent=35 // pred_check_branch
          %589 = sbr.rel (%p587) target = $region56
        $region55: #{tpu_custom_call.1} parent=35 // pred_region
          %v590 = vld [vmem:[#allocation2] sm:$0xff]
          %v591 = vld [vmem:[%s3] sm:$0x1]
          %v593 = vlaneseq
          %v594 = vshrl.u32 %v593, 7
          %v595 = vsub.s32 0, %v594
          %v596 = vrot.slane %v591, %v595
          %v598 = vadd.f32 %v590, %v596
          %599 = vst.msk [vmem:[%s253] sm:$0xff] %vm261, %v598
        $region56: #{tpu_custom_call.1} parent=35 // pred_fallthru
          _
        %s600 = sand.u32 %s131, 1
        %s601 = scalar_lea.sflag [#allocation5], %s600
        %s602 = sand.u32 %s131, 1
        %s603 = smul.addr %s602, 8
        %s604 = scalar_lea.vmem [#allocation9], %s603
        // Predicated region
        $region57: #{tpu_custom_call.1} parent=35 // pred_check
          %p605 = pneg %p141
        $region58: #{tpu_custom_call.1} parent=35 // pred_check_branch
          %607 = sbr.rel (%p605) target = $region60
        $region59: #{tpu_custom_call.1} parent=35 // pred_region
          %s609 = ssub.s32 128, 128
          %610 = vsyncadd %s601, %s609
          %s611 = smul.addr %s26, 128
          %s612 = scalar_lea.hbm %s4, %s611
          %s614 = sshll.u32 %s604, 4
          %s615 = int_to_ptr.vmem [resolvable:$true] %s614
          %617 = dma.vmem_to_hbm [thread:$0]  %s615, 128, %s612, %s601
        $region60: #{tpu_custom_call.1} parent=35 // pred_fallthru
          _
      $region36: #{tpu_custom_call.1} parent=5 // pred_fallthru
        _
      %p618 = scmp.le.s32.totalorder 2, %s17
      // Predicated region
      $region61: #{tpu_custom_call.1} parent=5 // pred_check
        %p619 = pneg %p618
      $region62: #{tpu_custom_call.1} parent=5 // pred_check_branch
        %621 = sbr.rel (%p619) target = $region64
      $region63: #{tpu_custom_call.1} parent=5 // pred_region
        %s622 = ssub.s32 %s17, 2
        // Predicated region
        $region65: #{tpu_custom_call.1} parent=63 // pred_check
          %p623 = pneg %p147
        $region66: #{tpu_custom_call.1} parent=63 // pred_check_branch
          %625 = sbr.rel (%p623) target = $region68
        $region67: #{tpu_custom_call.1} parent=63 // pred_region
          %s626 = sand.u32 %s132, 1
          %s627 = scalar_lea.sflag [#allocation5], %s626
          %s628 = sand.u32 %s132, 1
          %s629 = smul.addr %s628, 8
          %s630 = scalar_lea.vmem [#allocation9], %s629
          %631 = dma.done %s627, 128
        $region68: #{tpu_custom_call.1} parent=63 // pred_fallthru
          _
      $region64: #{tpu_custom_call.1} parent=5 // pred_fallthru
        _
    $region6: #{tpu_custom_call.1} parent=1 // loop_footer
      %s21 = sadd.s32 1, %s17
    $region7: #{tpu_custom_call.1} parent=1 // loop_footer_branch
      %16 = sbr.rel target = $region3
    $region8: #{tpu_custom_call.1} parent=1 // loop_exit
      _
    %632 = vsyncpa [#allocation4], 1
    %s633 = scalar_lea.sflag [#allocation4], 1
    %634 = vsyncpa %s633, 1
    %635 = vsyncpa [#allocation7], 1
    %636 = vsyncpa [#allocation5], 1
    %s637 = scalar_lea.sflag [#allocation5], 1
    %638 = vsyncpa %s637, 1

</llo_original>
